<compile_context>
chip_gen: v5e
topology: v5e:2x2
jax: 0.10.0
libtpu: 0.0.40
codegen_flags: <defaults>
</compile_context>

<pallas_src>
import functools
import math

import jax
import jax.numpy as jnp
import numpy as np
from jax.experimental import pallas as pl
from jax.experimental.pallas import tpu as pltpu


# ----------------------------- Pallas kernels ------------------------------ #
def _pe_add_kernel(x_ref, pe_ref, o_ref):
    # x_ref: [Ts, B, D], pe_ref: [Ts, 1, D] -> broadcast add over batch (sublanes).
    y = x_ref[...].astype(jnp.float32) + pe_ref[...].astype(jnp.float32)
    o_ref[...] = y.astype(o_ref.dtype)


def _pe_dropout_mask_kernel(x_ref, pe_ref, u_ref, o_ref, *, p):
    # Portable dropout path: uniform [0,1) mask generated outside the kernel.
    y = x_ref[...].astype(jnp.float32) + pe_ref[...].astype(jnp.float32)
    keep = u_ref[...] >= jnp.float32(p)
    y = jnp.where(keep, y * jnp.float32(1.0 / (1.0 - p)), jnp.float32(0.0))
    o_ref[...] = y.astype(o_ref.dtype)


def _pe_dropout_prng_kernel(seed_ref, x_ref, pe_ref, o_ref, *, p):
    # TPU hardware path: on-chip PRNG, per-tile seed so every grid step gets a
    # distinct dropout mask (required once the kernel is tiled over S).
    y = x_ref[...].astype(jnp.float32) + pe_ref[...].astype(jnp.float32)
    pltpu.prng_seed(seed_ref[0] + pl.program_id(0))
    bits = pltpu.bitcast(pltpu.prng_random_bits(y.shape), jnp.uint32)
    # P(bits < threshold) ~= p  (p < 1.0 is guaranteed by the wrapper).
    threshold = jnp.uint32(min(int(p * (2 ** 32)), 2 ** 32 - 1))
    keep = bits >= threshold
    y = jnp.where(keep, y * jnp.float32(1.0 / (1.0 - p)), jnp.float32(0.0))
    o_ref[...] = y.astype(o_ref.dtype)


# ----------------------- parameter (buffer) construction ------------------- #
def make_positional_encoding(d_model: int, max_len: int = 5000, dtype=jnp.float32):
    """Replicates PositionalEncoding.__init__ buffer `pe` (shape [max_len, 1, d_model])."""
    ori_d_model = d_model
    dm = d_model + 1 if d_model % 2 == 1 else d_model
    position = jnp.arange(max_len, dtype=jnp.float32)[:, None]            # [max_len, 1]
    div_term = jnp.exp(
        jnp.arange(0, dm, 2, dtype=jnp.float32) * (-math.log(10000.0) / dm)
    )                                                                      # [dm/2]
    ang = position * div_term                                              # [max_len, dm/2]
    pe = jnp.zeros((max_len, 1, dm), dtype=jnp.float32)
    pe = pe.at[:, 0, 0::2].set(jnp.sin(ang))
    pe = pe.at[:, 0, 1::2].set(jnp.cos(ang))
    if ori_d_model % 2 == 1:
        pe = pe[:, :, :-1]
    return pe.astype(dtype)


# --------------------------------- wrapper --------------------------------- #
def _pick_tile_s(S, B, D, itemsize, target_bytes=2 << 20):
    """Largest S-tile whose x/out tile is ~target_bytes (double-buffered x+pe+out
    then stays well under the scoped-VMEM budget on all TPU generations)."""
    rows = max(1, target_bytes // max(1, B * D * itemsize))
    tile_s = int(min(S, rows))
    if tile_s >= 8:
        tile_s = (tile_s // 8) * 8
    return max(1, tile_s)


def positional_encoding_forward(x, pe, *, p: float = 0.1, train: bool = False,
                                seed: int = 0, rng_key=None, use_onchip_prng=None):
    """x: [S, B, D], pe: [max_len, 1, D] -> [S, B, D]."""
    S, B, D = x.shape
    assert pe.shape[1] == 1 and pe.shape[2] == D and pe.shape[0] >= S

    # PyTorch dropout with p >= 1 zeros everything (avoid uint32 threshold wrap).
    if train and p >= 1.0:
        return jnp.zeros_like(x)

    itemsize = jnp.dtype(x.dtype).itemsize
    tile_s = _pick_tile_s(S, B, D, itemsize)
    grid = (pl.cdiv(S, tile_s),)
    # Elementwise over S -> embarrassingly parallel; lets v7x use both TCs.
    cparams = pltpu.CompilerParams(dimension_semantics=("parallel",))

    x_block = (tile_s, B, D)
    pe_block = (tile_s, 1, D)
    out_shape = jax.ShapeDtypeStruct((S, B, D), x.dtype)

    # ------------------------- eval: add only ------------------------------ #
    if (not train) or p <= 0.0:
        return pl.pallas_call(
            _pe_add_kernel,
            out_shape=out_shape,
            grid_spec=pltpu.PrefetchScalarGridSpec(
                num_scalar_prefetch=0,
                grid=grid,
                in_specs=[
                    pl.BlockSpec(x_block, lambda i: (i, 0, 0)),
                    pl.BlockSpec(pe_block, lambda i: (i, 0, 0)),   # reads pe[:S] rows only
                ],
                out_specs=pl.BlockSpec(x_block, lambda i: (i, 0, 0)),
            ),
            compiler_params=cparams,
        )(x, pe)

    # ------------------------ train: add + dropout ------------------------- #
    if use_onchip_prng is None:
        use_onchip_prng = (jax.default_backend() == "tpu")

    if use_onchip_prng:
        seed_arr = jnp.array([seed], dtype=jnp.int32)
        kernel = functools.partial(_pe_dropout_prng_kernel, p=float(p))
        return pl.pallas_call(
            kernel,
            out_shape=out_shape,
            grid_spec=pltpu.PrefetchScalarGridSpec(
                num_scalar_prefetch=1,                   # seed lives in SMEM
                grid=grid,
                in_specs=[
                    pl.BlockSpec(x_block, lambda i, seed: (i, 0, 0)),
                    pl.BlockSpec(pe_block, lambda i, seed: (i, 0, 0)),
                ],
                out_specs=pl.BlockSpec(x_block, lambda i, seed: (i, 0, 0)),
            ),
            compiler_params=cparams,
        )(seed_arr, x, pe)

    # Portable fallback (non-TPU / interpret backends): stream a host-generated
    # uniform mask through the same tiled pipeline.
    if rng_key is None:
        rng_key = jax.random.PRNGKey(seed)
    u = jax.random.uniform(rng_key, (S, B, D), dtype=jnp.float32)
    kernel = functools.partial(_pe_dropout_mask_kernel, p=float(p))
    return pl.pallas_call(
        kernel,
        out_shape=out_shape,
        grid_spec=pltpu.PrefetchScalarGridSpec(
            num_scalar_prefetch=0,
            grid=grid,
            in_specs=[
                pl.BlockSpec(x_block, lambda i: (i, 0, 0)),
                pl.BlockSpec(pe_block, lambda i: (i, 0, 0)),
                pl.BlockSpec(x_block, lambda i: (i, 0, 0)),
            ],
            out_specs=pl.BlockSpec(x_block, lambda i: (i, 0, 0)),
        ),
        compiler_params=cparams,
    )(x, pe, u)


# ----------------------------------- main ----------------------------------- #
if __name__ == "__main__":
    seq_len, batch, d_model = 8, 2, 32
    key = jax.random.PRNGKey(0)
    x = jax.random.normal(key, (seq_len, batch, d_model), dtype=jnp.float32)

    pe = make_positional_encoding(d_model, max_len=5000)

    # Eval mode (dropout == identity): deterministic, check against reference.
    y_eval = jax.block_until_ready(
        positional_encoding_forward(x, pe, p=0.1, train=False))
    ref = np.asarray(x) + np.asarray(pe[:seq_len])       # broadcast over batch
    np.testing.assert_allclose(np.asarray(y_eval), ref, rtol=1e-6, atol=1e-6)

    # Training mode: dropout path (on-chip PRNG on real TPU backends, host mask
    # fallback elsewhere). Kept elements equal (x + pe) / (1 - p).
    y_train = jax.block_until_ready(
        positional_encoding_forward(x, pe, p=0.1, train=True, seed=1234))
    assert y_train.shape == x.shape
    assert bool(jnp.all(jnp.isfinite(y_train)))

    print("KERNEL_OK")
</pallas_src>

<mosaic_0001>
module attributes {stable_mosaic.version = 11 : i64} {
  func.func @_pe_add_kernel(%arg0: i32, %arg1: memref<8x2x32xf32, #tpu.memory_space<vmem>>, %arg2: memref<8x1x32xf32, #tpu.memory_space<vmem>>, %arg3: memref<8x2x32xf32, #tpu.memory_space<vmem>>) attributes {dimension_semantics = [#tpu.dimension_semantics<parallel>], iteration_bounds = array<i64: 1>, scalar_prefetch = 0 : i64, scratch_operands = 0 : i64, tpu.core_type = #tpu.core_type<tc>, window_params = [{transform_indices = @transform_0, window_bounds = array<i64: 8, 2, 32>}, {transform_indices = @transform_1, window_bounds = array<i64: 8, 1, 32>}, {transform_indices = @transform_2, window_bounds = array<i64: 8, 2, 32>}]} {
    %c0 = arith.constant 0 : index
    %c0_0 = arith.constant 0 : index
    %c0_1 = arith.constant 0 : index
    %0 = vector.load %arg1[%c0, %c0_0, %c0_1] : memref<8x2x32xf32, #tpu.memory_space<vmem>>, vector<8x2x32xf32>
    %c0_2 = arith.constant 0 : index
    %c0_3 = arith.constant 0 : index
    %c0_4 = arith.constant 0 : index
    %1 = vector.load %arg2[%c0_2, %c0_3, %c0_4] : memref<8x1x32xf32, #tpu.memory_space<vmem>>, vector<8x1x32xf32>
    %2 = vector.broadcast %1 : vector<8x1x32xf32> to vector<8x2x32xf32>
    %3 = arith.addf %0, %2 : vector<8x2x32xf32>
    %c0_5 = arith.constant 0 : index
    %c0_6 = arith.constant 0 : index
    %c0_7 = arith.constant 0 : index
    %4 = vector.load %arg3[%c0_5, %c0_6, %c0_7] : memref<8x2x32xf32, #tpu.memory_space<vmem>>, vector<8x2x32xf32>
    tpu.vector_store %arg3[%c0_5, %c0_6, %c0_7], %3 {strides = array<i32>} : memref<8x2x32xf32, #tpu.memory_space<vmem>>, vector<8x2x32xf32>,
    return
  }
  func.func @transform_0(%arg0: i32) -> (i32, i32, i32) {
    %c0_i32 = arith.constant 0 : i32
    %c0_i32_0 = arith.constant 0 : i32
    %c0_i32_1 = arith.constant 0 : i32
    return %arg0, %c0_i32, %c0_i32_0 : i32, i32, i32
  }
  func.func @transform_1(%arg0: i32) -> (i32, i32, i32) {
    %c0_i32 = arith.constant 0 : i32
    %c0_i32_0 = arith.constant 0 : i32
    %c0_i32_1 = arith.constant 0 : i32
    return %arg0, %c0_i32, %c0_i32_0 : i32, i32, i32
  }
  func.func @transform_2(%arg0: i32) -> (i32, i32, i32) {
    %c0_i32 = arith.constant 0 : i32
    %c0_i32_0 = arith.constant 0 : i32
    %c0_i32_1 = arith.constant 0 : i32
    return %arg0, %c0_i32, %c0_i32_0 : i32, i32, i32
  }
}

</mosaic_0001>

<llo_original>
// kernel: tpu_custom_call.1
$region0: #{tpu_custom_call.1}
  #allocation0 [shape = 'u32[]', space=smem, size = 0x4, offset = 0x4, fixed_abs, tag = 'smem constant byte address 0x4 - core index']
  #allocation1 [shape = 'u32[72,128]{1,0:T(1,128)}', space=vmem, size = 0x9000, scoped, tag = 'internal scratch']
  %s0 = inlined_call_operand.vmem [shape: f32[8,2,32], index: 0, kind: input, shape index: {}]
  %s1 = inlined_call_operand.vmem [shape: f32[5000,1,32], index: 1, kind: input, shape index: {}]
  %s2 = inlined_call_operand.hbm [shape: f32[8,2,32], index: 2, kind: output, shape index: {}]
  %s3 = sld [smem:[#allocation0]]
  $region18: #{tpu_custom_call.1} parent=0
    _
  %s5 = ssub.s32 1, %s3
  %s6 = scalar_select 0, %s5, %s3
  $region1: #{tpu_custom_call.1} parent=0
    #allocation2 [shape = 'u8[8192]{0}', space=vmem, size = 0x2000, scoped, tag = 'output window, operand 0, single buffered']
    #allocation3 [shape = 's32[1]{0}', space=sflag, size = 0x4, scoped, tag = 'scoped memory for tpu_custom_call.1']
    %7 = vsyncpa [#allocation3], 0
    // Predicated region
    $region2: #{tpu_custom_call.1} parent=1 // pred_check
      _
    $region3: #{tpu_custom_call.1} parent=1 // pred_check_branch
      %9 = sbr.rel (0) target = $region5
    $region4: #{tpu_custom_call.1} parent=1 // pred_region
      _
    $region5: #{tpu_custom_call.1} parent=1 // pred_fallthru
      _
    // Predicated region
    $region6: #{tpu_custom_call.1} parent=1 // pred_check
      _
    $region7: #{tpu_custom_call.1} parent=1 // pred_check_branch
      %11 = sbr.rel (0) target = $region9
    $region8: #{tpu_custom_call.1} parent=1 // pred_region
      _
    $region9: #{tpu_custom_call.1} parent=1 // pred_fallthru
      _
    %v12 = vld [vmem:[%s0] sm:$0x3]
    %v13 = vld [vmem:[%s0 + $0x2] sm:$0x3]
    %v14 = vld [vmem:[%s0 + $0x4] sm:$0x3]
    %v15 = vld [vmem:[%s0 + $0x6] sm:$0x3]
    %v16 = vld [vmem:[%s0 + $0x8] sm:$0x3]
    %v17 = vld [vmem:[%s0 + $0xa] sm:$0x3]
    %v18 = vld [vmem:[%s0 + $0xc] sm:$0x3]
    %v19 = vld [vmem:[%s0 + $0xe] sm:$0x3]
    %v20 = vld [vmem:[%s1] sm:$0x1]
    %v21 = vld [vmem:[%s1 + $0x1] sm:$0x1]
    %v22 = vld [vmem:[%s1 + $0x2] sm:$0x1]
    %v23 = vld [vmem:[%s1 + $0x3] sm:$0x1]
    %v24 = vld [vmem:[%s1 + $0x4] sm:$0x1]
    %v25 = vld [vmem:[%s1 + $0x5] sm:$0x1]
    %v26 = vld [vmem:[%s1 + $0x6] sm:$0x1]
    %v27 = vld [vmem:[%s1 + $0x7] sm:$0x1]
    %v36 = vperm.slane %v20, 0
    %v37 = vperm.slane %v21, 0
    %v38 = vperm.slane %v22, 0
    %v39 = vperm.slane %v23, 0
    %v40 = vperm.slane %v24, 0
    %v41 = vperm.slane %v25, 0
    %v42 = vperm.slane %v26, 0
    %v43 = vperm.slane %v27, 0
    %v52 = vadd.f32 %v12, %v36
    %v53 = vadd.f32 %v13, %v37
    %v54 = vadd.f32 %v14, %v38
    %v55 = vadd.f32 %v15, %v39
    %v56 = vadd.f32 %v16, %v40
    %v57 = vadd.f32 %v17, %v41
    %v58 = vadd.f32 %v18, %v42
    %v59 = vadd.f32 %v19, %v43
    %vm60 = vcmask 254976
    %61 = vst.msk [vmem:[#allocation2] sm:$0x3] %vm60, %v52
    %62 = vst.msk [vmem:[#allocation2 + $0x2] sm:$0x3] %vm60, %v53
    %63 = vst.msk [vmem:[#allocation2 + $0x4] sm:$0x3] %vm60, %v54
    %64 = vst.msk [vmem:[#allocation2 + $0x6] sm:$0x3] %vm60, %v55
    %65 = vst.msk [vmem:[#allocation2 + $0x8] sm:$0x3] %vm60, %v56
    %66 = vst.msk [vmem:[#allocation2 + $0xa] sm:$0x3] %vm60, %v57
    %67 = vst.msk [vmem:[#allocation2 + $0xc] sm:$0x3] %vm60, %v58
    %68 = vst.msk [vmem:[#allocation2 + $0xe] sm:$0x3] %vm60, %v59
    // Predicated region
    $region10: #{tpu_custom_call.1} parent=1 // pred_check
      _
    $region11: #{tpu_custom_call.1} parent=1 // pred_check_branch
      %70 = sbr.rel (0) target = $region13
    $region12: #{tpu_custom_call.1} parent=1 // pred_region
      %72 = vsyncadd [#allocation3], 0
      %s73 = sshll.u32 [#allocation2], 4
      %s74 = int_to_ptr.vmem [resolvable:$true] %s73
      %s75 = sshll.u32 %s2, 4
      %s76 = int_to_ptr.hbm [resolvable:$true] %s75
      %81 = dma.vmem_to_hbm [thread:$0]  %s74, 256, %s76, [#allocation3], 32, 32, 2
    $region13: #{tpu_custom_call.1} parent=1 // pred_fallthru
      _
    // Predicated region
    $region14: #{tpu_custom_call.1} parent=1 // pred_check
      _
    $region15: #{tpu_custom_call.1} parent=1 // pred_check_branch
      %83 = sbr.rel (0) target = $region17
    $region16: #{tpu_custom_call.1} parent=1 // pred_region
      %85 = dma.done [#allocation3], 256
    $region17: #{tpu_custom_call.1} parent=1 // pred_fallthru
      _
    %86 = vsyncpa [#allocation3], 1

</llo_original>
